<compile_context>
chip_gen: v7x
topology: tpu7x:2x2x1
jax: 0.10.0
libtpu: 0.0.40
codegen_flags: <defaults>
</compile_context>

<pallas_src>
import functools
import math

import jax
import jax.numpy as jnp
from jax.experimental import pallas as pl
from jax.experimental.pallas import tpu as pltpu


def _residual_block_kernel(x_ref, mask_ref, w1_ref, b1_ref, alpha_ref,
                           w2_ref, b2_ref, o_ref, stacked_ref, *, shifts, cp):
    """One lane-axis block (whole images) per grid step.

    x_ref      : (Cp, L)      VMEM  channels-major input slab (lane-dense)
    mask_ref   : (9, L)       VMEM  tap validity masks {0,1} (grid-invariant)
    w1_ref     : (Cp, 9*Cp)   VMEM  conv1 weights, BN1 scale folded; [co, k*Cp+ci]
    b1_ref     : (Cp, 1)      VMEM  BN1 shift (beta - mean*scale)
    alpha_ref  : (1,)         SMEM  PReLU slope (single shared parameter)
    w2_ref     : (Cp, 9*Cp)   VMEM  conv2 weights, BN2 scale folded
    b2_ref     : (Cp, 1)      VMEM  BN2 shift
    o_ref      : (Cp, L)      VMEM  output slab
    stacked_ref: (9*Cp, L)    VMEM  scratch holding the 9 stacked taps
    """
    x = x_ref[...]                                  # (Cp, L) f32
    alpha = alpha_ref[0]                            # PReLU shared slope

    def conv3x3(inp, w_ref):
        # Stack the 9 rolled+masked taps along the contraction axis, then one matmul.
        for k, shift in enumerate(shifts):
            if shift == 0:
                tap = inp                           # center tap: no roll, mask == 1
            else:
                tap = pltpu.roll(inp, shift=shift, axis=1) * mask_ref[k:k + 1, :]
            stacked_ref[k * cp:(k + 1) * cp, :] = tap
        # (Cp, 9Cp) @ (9Cp, L) on the MXU, f32 accumulation.
        return jnp.dot(w_ref[...], stacked_ref[...],
                       preferred_element_type=jnp.float32)

    y = conv3x3(x, w1_ref) + b1_ref[...]            # conv1 + BN1 shift
    y = jnp.where(y > 0, y, alpha * y)              # PReLU (shared slope)
    z = conv3x3(y, w2_ref) + b2_ref[...]            # conv2 + BN2 shift
    o_ref[...] = (z + x).astype(o_ref.dtype)        # + residual, lane-dense store


def residual_block(x, w1, bn1, alpha, w2, bn2, eps=1e-5):
    """x: (N, C, H, W) float32 NCHW. w*: (C, C, 3, 3) OIHW. bn*: (gamma, beta, mean, var)."""
    N, C, H, W = x.shape
    HW = H * W
    CP = ((C + 7) // 8) * 8                         # pad channels to a sublane multiple

    # Keep >=2 parallel grid steps when the batch splits cleanly (feeds both v7x
    # TensorCores); otherwise fold everything into a single step.
    if N >= 2 and N % 2 == 0 and ((N // 2) * HW) % 128 == 0:
        n_blocks = 2
    else:
        n_blocks = 1
    NB = N // n_blocks
    L_blk = NB * HW

    def fold(w, gamma, beta, mean, var):
        scale = gamma / jnp.sqrt(var + eps)                          # (C,)
        wf = w.astype(jnp.float32) * scale[:, None, None, None]      # fold BN scale into conv
        wk = jnp.transpose(wf, (2, 3, 0, 1)).reshape(9, C, C)        # [k=kh*3+kw, co, ci]
        wk = jnp.pad(wk, ((0, 0), (0, CP - C), (0, CP - C)))
        w_stacked = jnp.transpose(wk, (1, 0, 2)).reshape(CP, 9 * CP)  # [co, k*Cp+ci]
        shift = jnp.pad(beta - mean * scale, (0, CP - C)).reshape(CP, 1)
        return w_stacked.astype(jnp.float32), shift.astype(jnp.float32)

    w1m, b1 = fold(w1, *bn1)
    w2m, b2 = fold(w2, *bn2)
    alpha_arr = jnp.asarray([alpha], jnp.float32)

    # Channels-major, batch folded into the lane axis, channel rows padded to Cp.
    x_t = jnp.transpose(x.astype(jnp.float32), (1, 0, 2, 3)).reshape(C, N * HW)
    x_t = jnp.pad(x_t, ((0, CP - C), (0, 0)))

    # Precompute roll shifts + tap validity masks (== the conv's zero padding),
    # hoisted out of the kernel. Masks are per-image, tiled over the NB images
    # in one block, and identical for every grid block.
    pos = jnp.arange(HW, dtype=jnp.int32)
    row, col = pos // W, pos % W
    shifts, mask_rows = [], []
    for dh in (-1, 0, 1):
        for dw in (-1, 0, 1):
            s = dh * W + dw
            shifts.append(int((-s) % L_blk))
            valid = ((row + dh >= 0) & (row + dh < H) &
                     (col + dw >= 0) & (col + dw < W))
            mask_rows.append(valid.astype(jnp.float32))
    mask = jnp.tile(jnp.stack(mask_rows, axis=0), (1, NB))           # (9, L_blk)

    smem_spec = pl.BlockSpec(memory_space=pltpu.MemorySpace.SMEM)
    kernel = functools.partial(_residual_block_kernel, shifts=tuple(shifts), cp=CP)

    out = pl.pallas_call(
        kernel,
        out_shape=jax.ShapeDtypeStruct((CP, N * HW), jnp.float32),
        grid_spec=pltpu.PrefetchScalarGridSpec(
            num_scalar_prefetch=0,
            grid=(n_blocks,),
            in_specs=[
                pl.BlockSpec((CP, L_blk), lambda i: (0, i)),         # input slab
                pl.BlockSpec((9, L_blk), lambda i: (0, 0)),          # tap masks (invariant)
                pl.BlockSpec((CP, 9 * CP), lambda i: (0, 0)),        # conv1+BN1 weights
                pl.BlockSpec((CP, 1), lambda i: (0, 0)),             # BN1 shift
                smem_spec,                                           # PReLU slope
                pl.BlockSpec((CP, 9 * CP), lambda i: (0, 0)),        # conv2+BN2 weights
                pl.BlockSpec((CP, 1), lambda i: (0, 0)),             # BN2 shift
            ],
            out_specs=pl.BlockSpec((CP, L_blk), lambda i: (0, i)),
            scratch_shapes=[pltpu.VMEM((9 * CP, L_blk), jnp.float32)],
        ),
        compiler_params=pltpu.CompilerParams(
            dimension_semantics=("parallel",),
            vmem_limit_bytes=32 * 1024 * 1024,
        ),
    )(x_t, mask, w1m, b1, alpha_arr, w2m, b2)

    out = out[:C].reshape(C, N, H, W)
    return jnp.transpose(out, (1, 0, 2, 3)).astype(x.dtype)


def reference_forward(x, w1, bn1, alpha, w2, bn2, eps=1e-5):
    """Pure-JAX reference matching the PyTorch module (BN in inference mode)."""
    def conv(z, w):
        return jax.lax.conv_general_dilated(
            z, w, window_strides=(1, 1), padding=((1, 1), (1, 1)),
            dimension_numbers=("NCHW", "OIHW", "NCHW"))

    def bn(z, gamma, beta, mean, var):
        s = gamma / jnp.sqrt(var + eps)
        return z * s[None, :, None, None] + (beta - mean * s)[None, :, None, None]

    y = bn(conv(x, w1), *bn1)
    y = jnp.where(y > 0, y, alpha * y)
    y = bn(conv(y, w2), *bn2)
    return y + x


if __name__ == "__main__":
    N, C, H, W = 2, 4, 16, 16
    keys = jax.random.split(jax.random.PRNGKey(0), 11)

    x = jax.random.normal(keys[0], (N, C, H, W), jnp.float32)

    # Conv2d default init bound (kaiming_uniform-ish), deterministic synthetic params.
    bound = 1.0 / math.sqrt(C * 3 * 3)
    w1 = jax.random.uniform(keys[1], (C, C, 3, 3), jnp.float32, -bound, bound)
    w2 = jax.random.uniform(keys[2], (C, C, 3, 3), jnp.float32, -bound, bound)
    bn1 = (1.0 + 0.1 * jax.random.normal(keys[3], (C,), jnp.float32),     # gamma
           0.1 * jax.random.normal(keys[4], (C,), jnp.float32),           # beta
           0.1 * jax.random.normal(keys[5], (C,), jnp.float32),           # running mean
           0.5 + jnp.abs(jax.random.normal(keys[6], (C,), jnp.float32)))  # running var
    bn2 = (1.0 + 0.1 * jax.random.normal(keys[7], (C,), jnp.float32),
           0.1 * jax.random.normal(keys[8], (C,), jnp.float32),
           0.1 * jax.random.normal(keys[9], (C,), jnp.float32),
           0.5 + jnp.abs(jax.random.normal(keys[10], (C,), jnp.float32)))
    alpha = 0.25  # nn.PReLU() default: one shared parameter initialized to 0.25

    out = residual_block(x, w1, bn1, alpha, w2, bn2)
    out = jax.block_until_ready(out)

    ref = reference_forward(x, w1, bn1, alpha, w2, bn2)
    assert out.shape == x.shape and out.dtype == x.dtype
    max_err = float(jnp.max(jnp.abs(out - ref)))
    assert jnp.allclose(out, ref, rtol=1e-4, atol=1e-4), f"max_err={max_err}"
    print("KERNEL_OK")
</pallas_src>

<mosaic_0001>
module attributes {stable_mosaic.version = 11 : i64} {
  func.func @_residual_block_kernel(%arg0: i32, %arg1: memref<8x256xf32, #tpu.memory_space<vmem>>, %arg2: memref<9x256xf32, #tpu.memory_space<vmem>>, %arg3: memref<8x72xf32, #tpu.memory_space<vmem>>, %arg4: memref<8x1xf32, #tpu.memory_space<vmem>>, %arg5: memref<1xf32, #tpu.memory_space<smem>>, %arg6: memref<8x72xf32, #tpu.memory_space<vmem>>, %arg7: memref<8x1xf32, #tpu.memory_space<vmem>>, %arg8: memref<8x256xf32, #tpu.memory_space<vmem>>, %arg9: memref<72x256xf32, #tpu.memory_space<vmem>>) attributes {dimension_semantics = [#tpu.dimension_semantics<parallel>], iteration_bounds = array<i64: 2>, scalar_prefetch = 0 : i64, scratch_operands = 1 : i64, tpu.core_type = #tpu.core_type<tc>, window_params = [{transform_indices = @transform_0, window_bounds = array<i64: 8, 256>}, {pipeline_mode = #tpu.pipeline_mode<synchronous>, transform_indices = @transform_1, window_bounds = array<i64: 9, 256>}, {pipeline_mode = #tpu.pipeline_mode<synchronous>, transform_indices = @transform_2, window_bounds = array<i64: 8, 72>}, {pipeline_mode = #tpu.pipeline_mode<synchronous>, transform_indices = @transform_3, window_bounds = array<i64: 8, 1>}, {transform_indices = @transform_4, window_bounds = array<i64: 1>}, {pipeline_mode = #tpu.pipeline_mode<synchronous>, transform_indices = @transform_5, window_bounds = array<i64: 8, 72>}, {pipeline_mode = #tpu.pipeline_mode<synchronous>, transform_indices = @transform_6, window_bounds = array<i64: 8, 1>}, {transform_indices = @transform_7, window_bounds = array<i64: 8, 256>}]} {
    %c0 = arith.constant 0 : index
    %c0_0 = arith.constant 0 : index
    %0 = vector.load %arg1[%c0, %c0_0] : memref<8x256xf32, #tpu.memory_space<vmem>>, vector<8x256xf32>
    %c0_1 = arith.constant 0 : index
    %1 = memref.load %arg5[%c0_1] : memref<1xf32, #tpu.memory_space<smem>>
    %c17_i32 = arith.constant 17 : i32
    %2 = tpu.dynamic_rotate %0 by %c17_i32 dim 1 : vector<8x256xf32>, i32 -> vector<8x256xf32>
    %c0_2 = arith.constant 0 : index
    %c0_3 = arith.constant 0 : index
    %3 = vector.load %arg2[%c0_2, %c0_3] : memref<9x256xf32, #tpu.memory_space<vmem>>, vector<1x256xf32>
    %4 = vector.broadcast %3 : vector<1x256xf32> to vector<8x256xf32>
    %5 = arith.mulf %2, %4 : vector<8x256xf32>
    %c0_4 = arith.constant 0 : index
    %c0_5 = arith.constant 0 : index
    %6 = vector.load %arg9[%c0_4, %c0_5] : memref<72x256xf32, #tpu.memory_space<vmem>>, vector<8x256xf32>
    tpu.vector_store %arg9[%c0_4, %c0_5], %5 {strides = array<i32>} : memref<72x256xf32, #tpu.memory_space<vmem>>, vector<8x256xf32>,
    %c16_i32 = arith.constant 16 : i32
    %7 = tpu.dynamic_rotate %0 by %c16_i32 dim 1 : vector<8x256xf32>, i32 -> vector<8x256xf32>
    %c1 = arith.constant 1 : index
    %c0_6 = arith.constant 0 : index
    %8 = vector.load %arg2[%c1, %c0_6] : memref<9x256xf32, #tpu.memory_space<vmem>>, vector<1x256xf32>
    %9 = vector.broadcast %8 : vector<1x256xf32> to vector<8x256xf32>
    %10 = arith.mulf %7, %9 : vector<8x256xf32>
    %c8 = arith.constant 8 : index
    %c0_7 = arith.constant 0 : index
    %11 = vector.load %arg9[%c8, %c0_7] : memref<72x256xf32, #tpu.memory_space<vmem>>, vector<8x256xf32>
    tpu.vector_store %arg9[%c8, %c0_7], %10 {strides = array<i32>} : memref<72x256xf32, #tpu.memory_space<vmem>>, vector<8x256xf32>,
    %c15_i32 = arith.constant 15 : i32
    %12 = tpu.dynamic_rotate %0 by %c15_i32 dim 1 : vector<8x256xf32>, i32 -> vector<8x256xf32>
    %c2 = arith.constant 2 : index
    %c0_8 = arith.constant 0 : index
    %13 = vector.load %arg2[%c2, %c0_8] : memref<9x256xf32, #tpu.memory_space<vmem>>, vector<1x256xf32>
    %14 = vector.broadcast %13 : vector<1x256xf32> to vector<8x256xf32>
    %15 = arith.mulf %12, %14 : vector<8x256xf32>
    %c16 = arith.constant 16 : index
    %c0_9 = arith.constant 0 : index
    %16 = vector.load %arg9[%c16, %c0_9] : memref<72x256xf32, #tpu.memory_space<vmem>>, vector<8x256xf32>
    tpu.vector_store %arg9[%c16, %c0_9], %15 {strides = array<i32>} : memref<72x256xf32, #tpu.memory_space<vmem>>, vector<8x256xf32>,
    %c1_i32 = arith.constant 1 : i32
    %17 = tpu.dynamic_rotate %0 by %c1_i32 dim 1 : vector<8x256xf32>, i32 -> vector<8x256xf32>
    %c3 = arith.constant 3 : index
    %c0_10 = arith.constant 0 : index
    %18 = vector.load %arg2[%c3, %c0_10] : memref<9x256xf32, #tpu.memory_space<vmem>>, vector<1x256xf32>
    %19 = vector.broadcast %18 : vector<1x256xf32> to vector<8x256xf32>
    %20 = arith.mulf %17, %19 : vector<8x256xf32>
    %c24 = arith.constant 24 : index
    %c0_11 = arith.constant 0 : index
    %21 = vector.load %arg9[%c24, %c0_11] : memref<72x256xf32, #tpu.memory_space<vmem>>, vector<8x256xf32>
    tpu.vector_store %arg9[%c24, %c0_11], %20 {strides = array<i32>} : memref<72x256xf32, #tpu.memory_space<vmem>>, vector<8x256xf32>,
    %c32 = arith.constant 32 : index
    %c0_12 = arith.constant 0 : index
    %22 = vector.load %arg9[%c32, %c0_12] : memref<72x256xf32, #tpu.memory_space<vmem>>, vector<8x256xf32>
    tpu.vector_store %arg9[%c32, %c0_12], %0 {strides = array<i32>} : memref<72x256xf32, #tpu.memory_space<vmem>>, vector<8x256xf32>,
    %c255_i32 = arith.constant 255 : i32
    %23 = tpu.dynamic_rotate %0 by %c255_i32 dim 1 : vector<8x256xf32>, i32 -> vector<8x256xf32>
    %c5 = arith.constant 5 : index
    %c0_13 = arith.constant 0 : index
    %24 = vector.load %arg2[%c5, %c0_13] : memref<9x256xf32, #tpu.memory_space<vmem>>, vector<1x256xf32>
    %25 = vector.broadcast %24 : vector<1x256xf32> to vector<8x256xf32>
    %26 = arith.mulf %23, %25 : vector<8x256xf32>
    %c40 = arith.constant 40 : index
    %c0_14 = arith.constant 0 : index
    %27 = vector.load %arg9[%c40, %c0_14] : memref<72x256xf32, #tpu.memory_space<vmem>>, vector<8x256xf32>
    tpu.vector_store %arg9[%c40, %c0_14], %26 {strides = array<i32>} : memref<72x256xf32, #tpu.memory_space<vmem>>, vector<8x256xf32>,
    %c241_i32 = arith.constant 241 : i32
    %28 = tpu.dynamic_rotate %0 by %c241_i32 dim 1 : vector<8x256xf32>, i32 -> vector<8x256xf32>
    %c6 = arith.constant 6 : index
    %c0_15 = arith.constant 0 : index
    %29 = vector.load %arg2[%c6, %c0_15] : memref<9x256xf32, #tpu.memory_space<vmem>>, vector<1x256xf32>
    %30 = vector.broadcast %29 : vector<1x256xf32> to vector<8x256xf32>
    %31 = arith.mulf %28, %30 : vector<8x256xf32>
    %c48 = arith.constant 48 : index
    %c0_16 = arith.constant 0 : index
    %32 = vector.load %arg9[%c48, %c0_16] : memref<72x256xf32, #tpu.memory_space<vmem>>, vector<8x256xf32>
    tpu.vector_store %arg9[%c48, %c0_16], %31 {strides = array<i32>} : memref<72x256xf32, #tpu.memory_space<vmem>>, vector<8x256xf32>,
    %c240_i32 = arith.constant 240 : i32
    %33 = tpu.dynamic_rotate %0 by %c240_i32 dim 1 : vector<8x256xf32>, i32 -> vector<8x256xf32>
    %c7 = arith.constant 7 : index
    %c0_17 = arith.constant 0 : index
    %34 = vector.load %arg2[%c7, %c0_17] : memref<9x256xf32, #tpu.memory_space<vmem>>, vector<1x256xf32>
    %35 = vector.broadcast %34 : vector<1x256xf32> to vector<8x256xf32>
    %36 = arith.mulf %33, %35 : vector<8x256xf32>
    %c56 = arith.constant 56 : index
    %c0_18 = arith.constant 0 : index
    %37 = vector.load %arg9[%c56, %c0_18] : memref<72x256xf32, #tpu.memory_space<vmem>>, vector<8x256xf32>
    tpu.vector_store %arg9[%c56, %c0_18], %36 {strides = array<i32>} : memref<72x256xf32, #tpu.memory_space<vmem>>, vector<8x256xf32>,
    %c239_i32 = arith.constant 239 : i32
    %38 = tpu.dynamic_rotate %0 by %c239_i32 dim 1 : vector<8x256xf32>, i32 -> vector<8x256xf32>
    %c8_19 = arith.constant 8 : index
    %c0_20 = arith.constant 0 : index
    %39 = vector.load %arg2[%c8_19, %c0_20] : memref<9x256xf32, #tpu.memory_space<vmem>>, vector<1x256xf32>
    %40 = vector.broadcast %39 : vector<1x256xf32> to vector<8x256xf32>
    %41 = arith.mulf %38, %40 : vector<8x256xf32>
    %c64 = arith.constant 64 : index
    %c0_21 = arith.constant 0 : index
    %42 = vector.load %arg9[%c64, %c0_21] : memref<72x256xf32, #tpu.memory_space<vmem>>, vector<8x256xf32>
    tpu.vector_store %arg9[%c64, %c0_21], %41 {strides = array<i32>} : memref<72x256xf32, #tpu.memory_space<vmem>>, vector<8x256xf32>,
    %c0_22 = arith.constant 0 : index
    %c0_23 = arith.constant 0 : index
    %43 = vector.load %arg3[%c0_22, %c0_23] : memref<8x72xf32, #tpu.memory_space<vmem>>, vector<8x72xf32>
    %c0_24 = arith.constant 0 : index
    %c0_25 = arith.constant 0 : index
    %44 = vector.load %arg9[%c0_24, %c0_25] : memref<72x256xf32, #tpu.memory_space<vmem>>, vector<72x256xf32>
    %cst = arith.constant dense<0.000000e+00> : vector<8x256xf32>
    %45 = tpu.matmul %43, %44, %cst {dimension_numbers = #tpu.dot_dimension_numbers<[1], [0], [0], [1], [0, 0, 1, 1], [], []>} : vector<8x72xf32>, vector<72x256xf32>, vector<8x256xf32> -> vector<8x256xf32>
    %c0_26 = arith.constant 0 : index
    %c0_27 = arith.constant 0 : index
    %46 = vector.load %arg4[%c0_26, %c0_27] : memref<8x1xf32, #tpu.memory_space<vmem>>, vector<8x1xf32>
    %47 = vector.broadcast %46 : vector<8x1xf32> to vector<8x256xf32>
    %48 = arith.addf %45, %47 : vector<8x256xf32>
    %cst_28 = arith.constant 0.000000e+00 : f32
    %49 = vector.broadcast %cst_28 : f32 to vector<8x256xf32>
    %50 = arith.cmpf ogt, %48, %49 : vector<8x256xf32>
    %51 = vector.broadcast %1 : f32 to vector<8x256xf32>
    %52 = arith.mulf %51, %48 : vector<8x256xf32>
    %53 = arith.select %50, %48, %52 : vector<8x256xi1>, vector<8x256xf32>
    %c17_i32_29 = arith.constant 17 : i32
    %54 = tpu.dynamic_rotate %53 by %c17_i32_29 dim 1 : vector<8x256xf32>, i32 -> vector<8x256xf32>
    %c0_30 = arith.constant 0 : index
    %c0_31 = arith.constant 0 : index
    %55 = vector.load %arg2[%c0_30, %c0_31] : memref<9x256xf32, #tpu.memory_space<vmem>>, vector<1x256xf32>
    %56 = vector.broadcast %55 : vector<1x256xf32> to vector<8x256xf32>
    %57 = arith.mulf %54, %56 : vector<8x256xf32>
    %c0_32 = arith.constant 0 : index
    %c0_33 = arith.constant 0 : index
    %58 = vector.load %arg9[%c0_32, %c0_33] : memref<72x256xf32, #tpu.memory_space<vmem>>, vector<8x256xf32>
    tpu.vector_store %arg9[%c0_32, %c0_33], %57 {strides = array<i32>} : memref<72x256xf32, #tpu.memory_space<vmem>>, vector<8x256xf32>,
    %c16_i32_34 = arith.constant 16 : i32
    %59 = tpu.dynamic_rotate %53 by %c16_i32_34 dim 1 : vector<8x256xf32>, i32 -> vector<8x256xf32>
    %c1_35 = arith.constant 1 : index
    %c0_36 = arith.constant 0 : index
    %60 = vector.load %arg2[%c1_35, %c0_36] : memref<9x256xf32, #tpu.memory_space<vmem>>, vector<1x256xf32>
    %61 = vector.broadcast %60 : vector<1x256xf32> to vector<8x256xf32>
    %62 = arith.mulf %59, %61 : vector<8x256xf32>
    %c8_37 = arith.constant 8 : index
    %c0_38 = arith.constant 0 : index
    %63 = vector.load %arg9[%c8_37, %c0_38] : memref<72x256xf32, #tpu.memory_space<vmem>>, vector<8x256xf32>
    tpu.vector_store %arg9[%c8_37, %c0_38], %62 {strides = array<i32>} : memref<72x256xf32, #tpu.memory_space<vmem>>, vector<8x256xf32>,
    %c15_i32_39 = arith.constant 15 : i32
    %64 = tpu.dynamic_rotate %53 by %c15_i32_39 dim 1 : vector<8x256xf32>, i32 -> vector<8x256xf32>
    %c2_40 = arith.constant 2 : index
    %c0_41 = arith.constant 0 : index
    %65 = vector.load %arg2[%c2_40, %c0_41] : memref<9x256xf32, #tpu.memory_space<vmem>>, vector<1x256xf32>
    %66 = vector.broadcast %65 : vector<1x256xf32> to vector<8x256xf32>
    %67 = arith.mulf %64, %66 : vector<8x256xf32>
    %c16_42 = arith.constant 16 : index
    %c0_43 = arith.constant 0 : index
    %68 = vector.load %arg9[%c16_42, %c0_43] : memref<72x256xf32, #tpu.memory_space<vmem>>, vector<8x256xf32>
    tpu.vector_store %arg9[%c16_42, %c0_43], %67 {strides = array<i32>} : memref<72x256xf32, #tpu.memory_space<vmem>>, vector<8x256xf32>,
    %c1_i32_44 = arith.constant 1 : i32
    %69 = tpu.dynamic_rotate %53 by %c1_i32_44 dim 1 : vector<8x256xf32>, i32 -> vector<8x256xf32>
    %c3_45 = arith.constant 3 : index
    %c0_46 = arith.constant 0 : index
    %70 = vector.load %arg2[%c3_45, %c0_46] : memref<9x256xf32, #tpu.memory_space<vmem>>, vector<1x256xf32>
    %71 = vector.broadcast %70 : vector<1x256xf32> to vector<8x256xf32>
    %72 = arith.mulf %69, %71 : vector<8x256xf32>
    %c24_47 = arith.constant 24 : index
    %c0_48 = arith.constant 0 : index
    %73 = vector.load %arg9[%c24_47, %c0_48] : memref<72x256xf32, #tpu.memory_space<vmem>>, vector<8x256xf32>
    tpu.vector_store %arg9[%c24_47, %c0_48], %72 {strides = array<i32>} : memref<72x256xf32, #tpu.memory_space<vmem>>, vector<8x256xf32>,
    %c32_49 = arith.constant 32 : index
    %c0_50 = arith.constant 0 : index
    %74 = vector.load %arg9[%c32_49, %c0_50] : memref<72x256xf32, #tpu.memory_space<vmem>>, vector<8x256xf32>
    tpu.vector_store %arg9[%c32_49, %c0_50], %53 {strides = array<i32>} : memref<72x256xf32, #tpu.memory_space<vmem>>, vector<8x256xf32>,
    %c255_i32_51 = arith.constant 255 : i32
    %75 = tpu.dynamic_rotate %53 by %c255_i32_51 dim 1 : vector<8x256xf32>, i32 -> vector<8x256xf32>
    %c5_52 = arith.constant 5 : index
    %c0_53 = arith.constant 0 : index
    %76 = vector.load %arg2[%c5_52, %c0_53] : memref<9x256xf32, #tpu.memory_space<vmem>>, vector<1x256xf32>
    %77 = vector.broadcast %76 : vector<1x256xf32> to vector<8x256xf32>
    %78 = arith.mulf %75, %77 : vector<8x256xf32>
    %c40_54 = arith.constant 40 : index
    %c0_55 = arith.constant 0 : index
    %79 = vector.load %arg9[%c40_54, %c0_55] : memref<72x256xf32, #tpu.memory_space<vmem>>, vector<8x256xf32>
    tpu.vector_store %arg9[%c40_54, %c0_55], %78 {strides = array<i32>} : memref<72x256xf32, #tpu.memory_space<vmem>>, vector<8x256xf32>,
    %c241_i32_56 = arith.constant 241 : i32
    %80 = tpu.dynamic_rotate %53 by %c241_i32_56 dim 1 : vector<8x256xf32>, i32 -> vector<8x256xf32>
    %c6_57 = arith.constant 6 : index
    %c0_58 = arith.constant 0 : index
    %81 = vector.load %arg2[%c6_57, %c0_58] : memref<9x256xf32, #tpu.memory_space<vmem>>, vector<1x256xf32>
    %82 = vector.broadcast %81 : vector<1x256xf32> to vector<8x256xf32>
    %83 = arith.mulf %80, %82 : vector<8x256xf32>
    %c48_59 = arith.constant 48 : index
    %c0_60 = arith.constant 0 : index
    %84 = vector.load %arg9[%c48_59, %c0_60] : memref<72x256xf32, #tpu.memory_space<vmem>>, vector<8x256xf32>
    tpu.vector_store %arg9[%c48_59, %c0_60], %83 {strides = array<i32>} : memref<72x256xf32, #tpu.memory_space<vmem>>, vector<8x256xf32>,
    %c240_i32_61 = arith.constant 240 : i32
    %85 = tpu.dynamic_rotate %53 by %c240_i32_61 dim 1 : vector<8x256xf32>, i32 -> vector<8x256xf32>
    %c7_62 = arith.constant 7 : index
    %c0_63 = arith.constant 0 : index
    %86 = vector.load %arg2[%c7_62, %c0_63] : memref<9x256xf32, #tpu.memory_space<vmem>>, vector<1x256xf32>
    %87 = vector.broadcast %86 : vector<1x256xf32> to vector<8x256xf32>
    %88 = arith.mulf %85, %87 : vector<8x256xf32>
    %c56_64 = arith.constant 56 : index
    %c0_65 = arith.constant 0 : index
    %89 = vector.load %arg9[%c56_64, %c0_65] : memref<72x256xf32, #tpu.memory_space<vmem>>, vector<8x256xf32>
    tpu.vector_store %arg9[%c56_64, %c0_65], %88 {strides = array<i32>} : memref<72x256xf32, #tpu.memory_space<vmem>>, vector<8x256xf32>,
    %c239_i32_66 = arith.constant 239 : i32
    %90 = tpu.dynamic_rotate %53 by %c239_i32_66 dim 1 : vector<8x256xf32>, i32 -> vector<8x256xf32>
    %c8_67 = arith.constant 8 : index
    %c0_68 = arith.constant 0 : index
    %91 = vector.load %arg2[%c8_67, %c0_68] : memref<9x256xf32, #tpu.memory_space<vmem>>, vector<1x256xf32>
    %92 = vector.broadcast %91 : vector<1x256xf32> to vector<8x256xf32>
    %93 = arith.mulf %90, %92 : vector<8x256xf32>
    %c64_69 = arith.constant 64 : index
    %c0_70 = arith.constant 0 : index
    %94 = vector.load %arg9[%c64_69, %c0_70] : memref<72x256xf32, #tpu.memory_space<vmem>>, vector<8x256xf32>
    tpu.vector_store %arg9[%c64_69, %c0_70], %93 {strides = array<i32>} : memref<72x256xf32, #tpu.memory_space<vmem>>, vector<8x256xf32>,
    %c0_71 = arith.constant 0 : index
    %c0_72 = arith.constant 0 : index
    %95 = vector.load %arg6[%c0_71, %c0_72] : memref<8x72xf32, #tpu.memory_space<vmem>>, vector<8x72xf32>
    %c0_73 = arith.constant 0 : index
    %c0_74 = arith.constant 0 : index
    %96 = vector.load %arg9[%c0_73, %c0_74] : memref<72x256xf32, #tpu.memory_space<vmem>>, vector<72x256xf32>
    %cst_75 = arith.constant dense<0.000000e+00> : vector<8x256xf32>
    %97 = tpu.matmul %95, %96, %cst_75 {dimension_numbers = #tpu.dot_dimension_numbers<[1], [0], [0], [1], [0, 0, 1, 1], [], []>} : vector<8x72xf32>, vector<72x256xf32>, vector<8x256xf32> -> vector<8x256xf32>
    %c0_76 = arith.constant 0 : index
    %c0_77 = arith.constant 0 : index
    %98 = vector.load %arg7[%c0_76, %c0_77] : memref<8x1xf32, #tpu.memory_space<vmem>>, vector<8x1xf32>
    %99 = vector.broadcast %98 : vector<8x1xf32> to vector<8x256xf32>
    %100 = arith.addf %97, %99 : vector<8x256xf32>
    %101 = arith.addf %100, %0 : vector<8x256xf32>
    %c0_78 = arith.constant 0 : index
    %c0_79 = arith.constant 0 : index
    %102 = vector.load %arg8[%c0_78, %c0_79] : memref<8x256xf32, #tpu.memory_space<vmem>>, vector<8x256xf32>
    tpu.vector_store %arg8[%c0_78, %c0_79], %101 {strides = array<i32>} : memref<8x256xf32, #tpu.memory_space<vmem>>, vector<8x256xf32>,
    return
  }
  func.func @transform_0(%arg0: i32) -> (i32, i32) {
    %c0_i32 = arith.constant 0 : i32
    %c0_i32_0 = arith.constant 0 : i32
    return %c0_i32, %arg0 : i32, i32
  }
  func.func @transform_1(%arg0: i32) -> (i32, i32) {
    %c0_i32 = arith.constant 0 : i32
    %c0_i32_0 = arith.constant 0 : i32
    %c0_i32_1 = arith.constant 0 : i32
    return %c0_i32, %c0_i32_0 : i32, i32
  }
  func.func @transform_2(%arg0: i32) -> (i32, i32) {
    %c0_i32 = arith.constant 0 : i32
    %c0_i32_0 = arith.constant 0 : i32
    %c0_i32_1 = arith.constant 0 : i32
    return %c0_i32, %c0_i32_0 : i32, i32
  }
  func.func @transform_3(%arg0: i32) -> (i32, i32) {
    %c0_i32 = arith.constant 0 : i32
    %c0_i32_0 = arith.constant 0 : i32
    %c0_i32_1 = arith.constant 0 : i32
    return %c0_i32, %c0_i32_0 : i32, i32
  }
  func.func @transform_4(%arg0: i32) -> i32 {
    %c0_i32 = arith.constant 0 : i32
    %c0_i32_0 = arith.constant 0 : i32
    return %c0_i32 : i32
  }
  func.func @transform_5(%arg0: i32) -> (i32, i32) {
    %c0_i32 = arith.constant 0 : i32
    %c0_i32_0 = arith.constant 0 : i32
    %c0_i32_1 = arith.constant 0 : i32
    return %c0_i32, %c0_i32_0 : i32, i32
  }
  func.func @transform_6(%arg0: i32) -> (i32, i32) {
    %c0_i32 = arith.constant 0 : i32
    %c0_i32_0 = arith.constant 0 : i32
    %c0_i32_1 = arith.constant 0 : i32
    return %c0_i32, %c0_i32_0 : i32, i32
  }
  func.func @transform_7(%arg0: i32) -> (i32, i32) {
    %c0_i32 = arith.constant 0 : i32
    %c0_i32_0 = arith.constant 0 : i32
    return %c0_i32, %arg0 : i32, i32
  }
}

</mosaic_0001>

<llo_original>
// kernel: tpu_custom_call.1
$region0: #{tpu_custom_call.1}
  #allocation0 [shape = 'u32[]', space=smem, size = 0x4, offset = 0x4, fixed_abs, tag = 'smem constant byte address 0x4 - core index']
  #allocation1 [shape = 'u32[144,128]{1,0:T(1,128)}', space=vmem, size = 0x12000, scoped, tag = 'internal scratch']
  #allocation2 [shape = 'f32[72,256]{1,0:T(8,128)}', space=vmem, size = 0x12000, scoped, tag = 'scratch operand']
  #allocation3 [shape = 'f32[1]{0:T(128)S(6)}', space=smem, size = 0x200, scoped, tag = 'scoped memory for tpu_custom_call.1']
  %s0 = inlined_call_operand.hbm [shape: f32[8,512], index: 0, kind: input, shape index: {}]
  %s1 = inlined_call_operand.hbm [shape: f32[9,256], index: 1, kind: input, shape index: {}]
  %s2 = inlined_call_operand.vmem [shape: f32[8,72], index: 2, kind: input, shape index: {}]
  %s3 = inlined_call_operand.vmem [shape: f32[8,1], index: 3, kind: input, shape index: {}]
  %s4 = inlined_call_operand.<no memory space> [shape: f32[1], index: 4, kind: input, shape index: {}]
  %s5 = inlined_call_operand.vmem [shape: f32[8,72], index: 5, kind: input, shape index: {}]
  %s6 = inlined_call_operand.vmem [shape: f32[8,1], index: 6, kind: input, shape index: {}]
  %s7 = inlined_call_operand.hbm [shape: f32[8,512], index: 7, kind: output, shape index: {}]
  %s8 = sld [smem:[#allocation0]]
  $region69: #{tpu_custom_call.1} parent=0
    _
  %s10 = ssub.s32 1, %s8
  %s11 = scalar_select 0, %s10, %s8
  %12 = sst [smem:[#allocation3]] %s4
  $region1: #{tpu_custom_call.1} parent=0
    #allocation4 [shape = 'u8[16384]{0}', space=vmem, size = 0x4000, scoped, tag = 'input window, operand 0']
    #allocation5 [shape = 's32[2]{0}', space=sflag, size = 0x8, scoped, tag = 'scoped memory for tpu_custom_call.1']
    #allocation6 [shape = 's32[2]{0}', space=sflag, size = 0x8, scoped, tag = 'scoped memory for tpu_custom_call.1']
    #allocation7 [shape = 'u8[16384]{0}', space=vmem, size = 0x4000, scoped, tag = 'input window, operand 1, single buffered']
    #allocation8 [shape = 's32[1]{0}', space=sflag, size = 0x4, scoped, tag = 'scoped memory for tpu_custom_call.1']
    #allocation9 [shape = 'u8[16384]{0}', space=vmem, size = 0x4000, scoped, tag = 'output window, operand 0']
    %13 = vsyncpa [#allocation5], 0
    %s14 = scalar_lea.sflag [#allocation5], 1
    %15 = vsyncpa %s14, 0
    %16 = vsyncpa [#allocation8], 0
    %17 = vsyncpa [#allocation6], 0
    %s18 = scalar_lea.sflag [#allocation6], 1
    %19 = vsyncpa %s18, 0
    loop: start=0, step=1, limit=4
    $region2: #{tpu_custom_call.1} parent=1 // loop_pre_header
      _
    $region3: #{tpu_custom_call.1} parent=1 // loop_header
      %s21 = sphi 0, %s25
      %p22 = scmp.ge.s32.totalorder %s21, 4
      %s31 = sphi 0, %s33
      %s34 = sphi 0, %s31
      %s35 = sphi 0, %s34
      %s51 = sphi 0, %s35
      %s55 = sphi 0, %s55
      %s57 = sphi 0, %s55
      %s58 = sphi 0, %s57
      %s72 = sphi 0, %s58
      %s76 = sphi 0, %s76
      %s78 = sphi 0, %s76
      %s79 = sphi 0, %s78
      %s93 = sphi 0, %s79
      %s97 = sphi 0, %s97
      %s99 = sphi 0, %s97
      %s100 = sphi 0, %s99
      %s114 = sphi 0, %s100
      %s118 = sphi 0, %s118
      %s120 = sphi 0, %s118
      %s121 = sphi 0, %s120
      %s135 = sphi 0, %s121
      %s139 = sphi 0, %s139
      %s141 = sphi 0, %s139
      %s142 = sphi 0, %s141
      %s156 = sphi 0, %s142
      %s160 = sphi 0, %s160
      %s162 = sphi 0, %s160
      %s163 = sphi 0, %s162
      %s177 = sphi 0, %s163
      %s183 = sphi 0, %s185
      %s186 = sphi 0, %s183
      %s187 = sphi 0, %s186
      %s203 = sphi 0, %s187
    $region4: #{tpu_custom_call.1} parent=1 // loop_header_branch
      %24 = sbr.rel (%p22) target = $region8
    $region5: #{tpu_custom_call.1} parent=1 // loop_body
      %s26 = ssub.s32 %s21, 1
      %s27 = ssub.s32 %s21, 2
      %s28 = sadd.s32 %s21, 1
      %s29 = ssub.s32 %s21, %s28
      %p30 = scmp.eq.s32.totalorder %s29, 0
      %s32 = sadd.s32 %s31, 1
      %s33 = scalar_select %p30, %s31, %s32
      %p36 = pneg %p30
      %p37 = scmp.eq.s32.totalorder %s21, 1
      %p38 = por %p36, %p37
      %p39 = scmp.ne.s32.totalorder %s31, %s34
      %p40 = scmp.eq.s32.totalorder %s21, 0
      %p41 = por %p39, %p40
      %p42 = scmp.ne.s32.totalorder %s31, %s34
      %p43 = scmp.eq.s32.totalorder %s26, 1
      %p44 = por %p42, %p43
      %p45 = scmp.ne.s32.totalorder %s34, %s35
      %p46 = scmp.eq.s32.totalorder %s26, 0
      %p47 = por %p45, %p46
      %p48 = scmp.ne.s32.totalorder %s34, %s35
      %p49 = scmp.eq.s32.totalorder %s27, 1
      %p50 = por %p48, %p49
      %p52 = scmp.ne.s32.totalorder %s35, %s51
      %p53 = scmp.eq.s32.totalorder %s27, 0
      %p54 = por %p52, %p53
      %s56 = sadd.s32 %s55, 1
      %p59 = scmp.eq.s32.totalorder %s21, 1
      %p60 = scmp.ne.s32.totalorder %s55, %s57
      %p61 = scmp.eq.s32.totalorder %s21, 0
      %p62 = por %p60, %p61
      %p63 = scmp.ne.s32.totalorder %s55, %s57
      %p64 = scmp.eq.s32.totalorder %s26, 1
      %p65 = por %p63, %p64
      %p66 = scmp.ne.s32.totalorder %s57, %s58
      %p67 = scmp.eq.s32.totalorder %s26, 0
      %p68 = por %p66, %p67
      %p69 = scmp.ne.s32.totalorder %s57, %s58
      %p70 = scmp.eq.s32.totalorder %s27, 1
      %p71 = por %p69, %p70
      %p73 = scmp.ne.s32.totalorder %s58, %s72
      %p74 = scmp.eq.s32.totalorder %s27, 0
      %p75 = por %p73, %p74
      %s77 = sadd.s32 %s76, 1
      %p80 = scmp.eq.s32.totalorder %s21, 1
      %p81 = scmp.ne.s32.totalorder %s76, %s78
      %p82 = scmp.eq.s32.totalorder %s21, 0
      %p83 = por %p81, %p82
      %p84 = scmp.ne.s32.totalorder %s76, %s78
      %p85 = scmp.eq.s32.totalorder %s26, 1
      %p86 = por %p84, %p85
      %p87 = scmp.ne.s32.totalorder %s78, %s79
      %p88 = scmp.eq.s32.totalorder %s26, 0
      %p89 = por %p87, %p88
      %p90 = scmp.ne.s32.totalorder %s78, %s79
      %p91 = scmp.eq.s32.totalorder %s27, 1
      %p92 = por %p90, %p91
      %p94 = scmp.ne.s32.totalorder %s79, %s93
      %p95 = scmp.eq.s32.totalorder %s27, 0
      %p96 = por %p94, %p95
      %s98 = sadd.s32 %s97, 1
      %p101 = scmp.eq.s32.totalorder %s21, 1
      %p102 = scmp.ne.s32.totalorder %s97, %s99
      %p103 = scmp.eq.s32.totalorder %s21, 0
      %p104 = por %p102, %p103
      %p105 = scmp.ne.s32.totalorder %s97, %s99
      %p106 = scmp.eq.s32.totalorder %s26, 1
      %p107 = por %p105, %p106
      %p108 = scmp.ne.s32.totalorder %s99, %s100
      %p109 = scmp.eq.s32.totalorder %s26, 0
      %p110 = por %p108, %p109
      %p111 = scmp.ne.s32.totalorder %s99, %s100
      %p112 = scmp.eq.s32.totalorder %s27, 1
      %p113 = por %p111, %p112
      %p115 = scmp.ne.s32.totalorder %s100, %s114
      %p116 = scmp.eq.s32.totalorder %s27, 0
      %p117 = por %p115, %p116
      %s119 = sadd.s32 %s118, 1
      %p122 = scmp.eq.s32.totalorder %s21, 1
      %p123 = scmp.ne.s32.totalorder %s118, %s120
      %p124 = scmp.eq.s32.totalorder %s21, 0
      %p125 = por %p123, %p124
      %p126 = scmp.ne.s32.totalorder %s118, %s120
      %p127 = scmp.eq.s32.totalorder %s26, 1
      %p128 = por %p126, %p127
      %p129 = scmp.ne.s32.totalorder %s120, %s121
      %p130 = scmp.eq.s32.totalorder %s26, 0
      %p131 = por %p129, %p130
      %p132 = scmp.ne.s32.totalorder %s120, %s121
      %p133 = scmp.eq.s32.totalorder %s27, 1
      %p134 = por %p132, %p133
      %p136 = scmp.ne.s32.totalorder %s121, %s135
      %p137 = scmp.eq.s32.totalorder %s27, 0
      %p138 = por %p136, %p137
      %s140 = sadd.s32 %s139, 1
      %p143 = scmp.eq.s32.totalorder %s21, 1
      %p144 = scmp.ne.s32.totalorder %s139, %s141
      %p145 = scmp.eq.s32.totalorder %s21, 0
      %p146 = por %p144, %p145
      %p147 = scmp.ne.s32.totalorder %s139, %s141
      %p148 = scmp.eq.s32.totalorder %s26, 1
      %p149 = por %p147, %p148
      %p150 = scmp.ne.s32.totalorder %s141, %s142
      %p151 = scmp.eq.s32.totalorder %s26, 0
      %p152 = por %p150, %p151
      %p153 = scmp.ne.s32.totalorder %s141, %s142
      %p154 = scmp.eq.s32.totalorder %s27, 1
      %p155 = por %p153, %p154
      %p157 = scmp.ne.s32.totalorder %s142, %s156
      %p158 = scmp.eq.s32.totalorder %s27, 0
      %p159 = por %p157, %p158
      %s161 = sadd.s32 %s160, 1
      %p164 = scmp.eq.s32.totalorder %s21, 1
      %p165 = scmp.ne.s32.totalorder %s160, %s162
      %p166 = scmp.eq.s32.totalorder %s21, 0
      %p167 = por %p165, %p166
      %p168 = scmp.ne.s32.totalorder %s160, %s162
      %p169 = scmp.eq.s32.totalorder %s26, 1
      %p170 = por %p168, %p169
      %p171 = scmp.ne.s32.totalorder %s162, %s163
      %p172 = scmp.eq.s32.totalorder %s26, 0
      %p173 = por %p171, %p172
      %p174 = scmp.ne.s32.totalorder %s162, %s163
      %p175 = scmp.eq.s32.totalorder %s27, 1
      %p176 = por %p174, %p175
      %p178 = scmp.ne.s32.totalorder %s163, %s177
      %p179 = scmp.eq.s32.totalorder %s27, 0
      %p180 = por %p178, %p179
      %s181 = ssub.s32 %s21, %s28
      %p182 = scmp.eq.s32.totalorder %s181, 0
      %s184 = sadd.s32 %s183, 1
      %s185 = scalar_select %p182, %s183, %s184
      %p188 = pneg %p182
      %p189 = scmp.eq.s32.totalorder %s21, 1
      %p190 = por %p188, %p189
      %p191 = scmp.ne.s32.totalorder %s183, %s186
      %p192 = scmp.eq.s32.totalorder %s21, 0
      %p193 = por %p191, %p192
      %p194 = scmp.ne.s32.totalorder %s183, %s186
      %p195 = scmp.eq.s32.totalorder %s26, 1
      %p196 = por %p194, %p195
      %p197 = scmp.ne.s32.totalorder %s186, %s187
      %p198 = scmp.eq.s32.totalorder %s26, 0
      %p199 = por %p197, %p198
      %p200 = scmp.ne.s32.totalorder %s186, %s187
      %p201 = scmp.eq.s32.totalorder %s27, 1
      %p202 = por %p200, %p201
      %p204 = scmp.ne.s32.totalorder %s187, %s203
      %p205 = scmp.eq.s32.totalorder %s27, 0
      %p206 = por %p204, %p205
      %p207 = scmp.le.s32.totalorder 1, %s21
      %p208 = scmp.lt.s32.totalorder %s21, 3
      %p209 = pnand %p207, %p208
      %p210 = pneg %p209
      // Predicated region
      $region9: #{tpu_custom_call.1} parent=5 // pred_check
        _
      $region10: #{tpu_custom_call.1} parent=5 // pred_check_branch
        %212 = sbr.rel (%p209) target = $region12
      $region11: #{tpu_custom_call.1} parent=5 // pred_region
        %s213 = ssub.s32 %s21, 1
        // Predicated region
        $region13: #{tpu_custom_call.1} parent=11 // pred_check
          %p214 = pneg %p68
        $region14: #{tpu_custom_call.1} parent=11 // pred_check_branch
          %216 = sbr.rel (%p214) target = $region16
        $region15: #{tpu_custom_call.1} parent=11 // pred_region
          %s218 = ssub.s32 512, 512
          %219 = vsyncadd [#allocation8], %s218
          %s220 = sshll.u32 [#allocation7], 4
          %s221 = int_to_ptr.vmem [resolvable:$true] %s220
          %226 = dma.hbm_to_vmem [thread:$0]  %s1, 512, %s221, [#allocation8], 256, 256, 16
        $region16: #{tpu_custom_call.1} parent=11 // pred_fallthru
          _
        // Predicated region
        $region17: #{tpu_custom_call.1} parent=11 // pred_check
          %p227 = pneg %p89
        $region18: #{tpu_custom_call.1} parent=11 // pred_check_branch
          %229 = sbr.rel (%p227) target = $region20
        $region19: #{tpu_custom_call.1} parent=11 // pred_region
          _
        $region20: #{tpu_custom_call.1} parent=11 // pred_fallthru
          _
        // Predicated region
        $region21: #{tpu_custom_call.1} parent=11 // pred_check
          %p230 = pneg %p110
        $region22: #{tpu_custom_call.1} parent=11 // pred_check_branch
          %232 = sbr.rel (%p230) target = $region24
        $region23: #{tpu_custom_call.1} parent=11 // pred_region
          _
        $region24: #{tpu_custom_call.1} parent=11 // pred_fallthru
          _
        // Predicated region
        $region25: #{tpu_custom_call.1} parent=11 // pred_check
          %p233 = pneg %p131
        $region26: #{tpu_custom_call.1} parent=11 // pred_check_branch
          %235 = sbr.rel (%p233) target = $region28
        $region27: #{tpu_custom_call.1} parent=11 // pred_region
          _
        $region28: #{tpu_custom_call.1} parent=11 // pred_fallthru
          _
        // Predicated region
        $region29: #{tpu_custom_call.1} parent=11 // pred_check
          %p236 = pneg %p152
        $region30: #{tpu_custom_call.1} parent=11 // pred_check_branch
          %238 = sbr.rel (%p236) target = $region32
        $region31: #{tpu_custom_call.1} parent=11 // pred_region
          _
        $region32: #{tpu_custom_call.1} parent=11 // pred_fallthru
          _
        // Predicated region
        $region33: #{tpu_custom_call.1} parent=11 // pred_check
          %p239 = pneg %p173
        $region34: #{tpu_custom_call.1} parent=11 // pred_check_branch
          %241 = sbr.rel (%p239) target = $region36
        $region35: #{tpu_custom_call.1} parent=11 // pred_region
          _
        $region36: #{tpu_custom_call.1} parent=11 // pred_fallthru
          _
      $region12: #{tpu_custom_call.1} parent=5 // pred_fallthru
        _
      %p242 = scmp.lt.s32.totalorder %s21, 2
      // Predicated region
      $region37: #{tpu_custom_call.1} parent=5 // pred_check
        %p243 = pneg %p242
      $region38: #{tpu_custom_call.1} parent=5 // pred_check_branch
        %245 = sbr.rel (%p243) target = $region40
      $region39: #{tpu_custom_call.1} parent=5 // pred_region
        // Predicated region
        $region41: #{tpu_custom_call.1} parent=39 // pred_check
          %p246 = pneg %p41
        $region42: #{tpu_custom_call.1} parent=39 // pred_check_branch
          %248 = sbr.rel (%p246) target = $region44
        $region43: #{tpu_custom_call.1} parent=39 // pred_region
          %s249 = sand.u32 %s31, 1
          %s250 = scalar_lea.sflag [#allocation5], %s249
          %s251 = sand.u32 %s31, 1
          %s252 = smul.addr %s251, 16
          %s253 = scalar_lea.vmem [#allocation4], %s252
          %s254 = smul.u32 2, %s21
          %s256 = ssub.s32 256, 256
          %257 = vsyncadd %s250, %s256
          %s258 = smul.addr %s254, 128
          %s259 = scalar_lea.hbm %s0, %s258
          %s261 = sshll.u32 %s253, 4
          %s262 = int_to_ptr.vmem [resolvable:$true] %s261
          %264 = dma.hbm_to_vmem [thread:$0]  %s259, 256, %s262, %s250
        $region44: #{tpu_custom_call.1} parent=39 // pred_fallthru
          _
      $region40: #{tpu_custom_call.1} parent=5 // pred_fallthru
        _
      %p265 = scmp.le.s32.totalorder 1, %s21
      %p266 = scmp.lt.s32.totalorder %s21, 3
      %p267 = pnand %p265, %p266
      %p268 = pneg %p267
      // Predicated region
      $region45: #{tpu_custom_call.1} parent=5 // pred_check
        _
      $region46: #{tpu_custom_call.1} parent=5 // pred_check_branch
        %270 = sbr.rel (%p267) target = $region48
      $region47: #{tpu_custom_call.1} parent=5 // pred_region
        %s271 = ssub.s32 %s21, 1
        %s272 = sand.u32 %s34, 1
        %s273 = scalar_lea.sflag [#allocation5], %s272
        %s274 = sand.u32 %s34, 1
        %s275 = smul.addr %s274, 16
        %s276 = scalar_lea.vmem [#allocation4], %s275
        // Predicated region
        $region49: #{tpu_custom_call.1} parent=47 // pred_check
          %p277 = pneg %p47
        $region50: #{tpu_custom_call.1} parent=47 // pred_check_branch
          %279 = sbr.rel (%p277) target = $region52
        $region51: #{tpu_custom_call.1} parent=47 // pred_region
          %280 = dma.done %s273, 256
        $region52: #{tpu_custom_call.1} parent=47 // pred_fallthru
          _
        // Predicated region
        $region53: #{tpu_custom_call.1} parent=47 // pred_check
          %p281 = pneg %p68
        $region54: #{tpu_custom_call.1} parent=47 // pred_check_branch
          %283 = sbr.rel (%p281) target = $region56
        $region55: #{tpu_custom_call.1} parent=47 // pred_region
          %284 = dma.done [#allocation8], 512
        $region56: #{tpu_custom_call.1} parent=47 // pred_fallthru
          _
        %s285 = sand.u32 %s34, 1
        %s286 = scalar_lea.sflag [#allocation5], %s285
        %s287 = sand.u32 %s34, 1
        %s288 = smul.addr %s287, 16
        %s289 = scalar_lea.vmem [#allocation4], %s288
        %p290 = pneg %p47
        %p291 = pneg %p44
        %p292 = pneg %p68
        %p293 = pneg %p65
        %p294 = pneg %p89
        %p295 = pneg %p86
        %p296 = pneg %p110
        %p297 = pneg %p107
        %p298 = pneg %p131
        %p299 = pneg %p128
        %p300 = pneg %p152
        %p301 = pneg %p149
        %p302 = pneg %p173
        %p303 = pneg %p170
        %p304 = pneg %p199
        %p305 = pneg %p196
        %s306 = sand.u32 %s186, 1
        %s307 = scalar_lea.sflag [#allocation6], %s306
        %s308 = sand.u32 %s186, 1
        %s309 = smul.addr %s308, 16
        %s310 = scalar_lea.vmem [#allocation9], %s309
        %s311 = smul.u32 2, %s26
        %s312 = smul.u32 2, %s26
        %v313 = vld [vmem:[%s276] sm:$0xff]
        %v314 = vld [vmem:[%s276 + $0x8] sm:$0xff]
        %s315 = sld [smem:[#allocation3]]
        %316 = vrot.lane.b32.xlu0 %v313, 17
        %v317 = vpop.permute.xlu0 %316
        %318 = vrot.lane.b32.xlu0 %v314, 17
        %v319 = vpop.permute.xlu0 %318
        %v320 = vlaneseq
        %v321 = vand.u32 %v320, 127
        %vm322 = vcmp.lt.s32.totalorder %v321, 17
        %v323 = vsel %vm322, %v317, %v319
        %v324 = vsel %vm322, %v319, %v317
        %v325 = vld [vmem:[#allocation7] ss:$8 sm:$0x3]
        %v327 = vlaneseq
        %v328 = vshrl.u32 %v327, 7
        %v329 = vsub.s32 0, %v328
        %v330 = vrot.slane %v325, %v329
        %v331 = vlaneseq
        %v332 = vshrl.u32 %v331, 7
        %v333 = vsub.s32 1, %v332
        %v334 = vrot.slane %v325, %v333
        %v337 = vmul.f32 %v324, %v330
        %v338 = vmul.f32 %v323, %v334
        %339 = vst [vmem:[#allocation2] sm:$0xff] %v337
        %340 = vst [vmem:[#allocation2 + $0x8] sm:$0xff] %v338
        %341 = vrot.lane.b32.xlu0 %v313, 16
        %v342 = vpop.permute.xlu0 %341
        %343 = vrot.lane.b32.xlu0 %v314, 16
        %v344 = vpop.permute.xlu0 %343
        %vm345 = vcmp.lt.s32.totalorder %v321, 16
        %v346 = vsel %vm345, %v342, %v344
        %v347 = vsel %vm345, %v344, %v342
        %s348 = scalar_lea.vmem [#allocation7], 1
        %v349 = vld [vmem:[%s348] ss:$8 sm:$0x3]
        %v351 = vlaneseq
        %v352 = vshrl.u32 %v351, 7
        %v353 = vsub.s32 0, %v352
        %v354 = vrot.slane %v349, %v353
        %v355 = vlaneseq
        %v356 = vshrl.u32 %v355, 7
        %v357 = vsub.s32 1, %v356
        %v358 = vrot.slane %v349, %v357
        %v361 = vmul.f32 %v347, %v354
        %v362 = vmul.f32 %v346, %v358
        %363 = vst [vmem:[#allocation2 + $0x10] sm:$0xff] %v361
        %364 = vst [vmem:[#allocation2 + $0x18] sm:$0xff] %v362
        %365 = vrot.lane.b32.xlu0 %v313, 15
        %v366 = vpop.permute.xlu0 %365
        %367 = vrot.lane.b32.xlu0 %v314, 15
        %v368 = vpop.permute.xlu0 %367
        %vm369 = vcmp.lt.s32.totalorder %v321, 15
        %v370 = vsel %vm369, %v366, %v368
        %v371 = vsel %vm369, %v368, %v366
        %s372 = scalar_lea.vmem [#allocation7], 2
        %v373 = vld [vmem:[%s372] ss:$8 sm:$0x3]
        %v375 = vlaneseq
        %v376 = vshrl.u32 %v375, 7
        %v377 = vsub.s32 0, %v376
        %v378 = vrot.slane %v373, %v377
        %v379 = vlaneseq
        %v380 = vshrl.u32 %v379, 7
        %v381 = vsub.s32 1, %v380
        %v382 = vrot.slane %v373, %v381
        %v385 = vmul.f32 %v371, %v378
        %v386 = vmul.f32 %v370, %v382
        %387 = vst [vmem:[#allocation2 + $0x20] sm:$0xff] %v385
        %388 = vst [vmem:[#allocation2 + $0x28] sm:$0xff] %v386
        %389 = vrot.lane.b32.xlu0 %v313, 1
        %v390 = vpop.permute.xlu0 %389
        %391 = vrot.lane.b32.xlu0 %v314, 1
        %v392 = vpop.permute.xlu0 %391
        %vm393 = vcmp.lt.s32.totalorder %v321, 1
        %v394 = vsel %vm393, %v390, %v392
        %v395 = vsel %vm393, %v392, %v390
        %s396 = scalar_lea.vmem [#allocation7], 3
        %v397 = vld [vmem:[%s396] ss:$8 sm:$0x3]
        %v399 = vlaneseq
        %v400 = vshrl.u32 %v399, 7
        %v401 = vsub.s32 0, %v400
        %v402 = vrot.slane %v397, %v401
        %v403 = vlaneseq
        %v404 = vshrl.u32 %v403, 7
        %v405 = vsub.s32 1, %v404
        %v406 = vrot.slane %v397, %v405
        %v409 = vmul.f32 %v395, %v402
        %v410 = vmul.f32 %v394, %v406
        %411 = vst [vmem:[#allocation2 + $0x30] sm:$0xff] %v409
        %412 = vst [vmem:[#allocation2 + $0x38] sm:$0xff] %v410
        %413 = vst [vmem:[#allocation2 + $0x40] sm:$0xff] %v313
        %414 = vst [vmem:[#allocation2 + $0x48] sm:$0xff] %v314
        %415 = vrot.lane.b32.xlu0 %v313, 127
        %v416 = vpop.permute.xlu0 %415
        %417 = vrot.lane.b32.xlu0 %v314, 127
        %v418 = vpop.permute.xlu0 %417
        %vm419 = vcmp.lt.s32.totalorder %v321, 127
        %v420 = vsel %vm419, %v416, %v418
        %v421 = vsel %vm419, %v418, %v416
        %s422 = scalar_lea.vmem [#allocation7], 5
        %v423 = vld [vmem:[%s422] ss:$8 sm:$0x3]
        %v425 = vlaneseq
        %v426 = vshrl.u32 %v425, 7
        %v427 = vsub.s32 0, %v426
        %v428 = vrot.slane %v423, %v427
        %v429 = vlaneseq
        %v430 = vshrl.u32 %v429, 7
        %v431 = vsub.s32 1, %v430
        %v432 = vrot.slane %v423, %v431
        %v435 = vmul.f32 %v420, %v428
        %v436 = vmul.f32 %v421, %v432
        %437 = vst [vmem:[#allocation2 + $0x50] sm:$0xff] %v435
        %438 = vst [vmem:[#allocation2 + $0x58] sm:$0xff] %v436
        %439 = vrot.lane.b32.xlu0 %v313, 113
        %v440 = vpop.permute.xlu0 %439
        %441 = vrot.lane.b32.xlu0 %v314, 113
        %v442 = vpop.permute.xlu0 %441
        %vm443 = vcmp.lt.s32.totalorder %v321, 113
        %v444 = vsel %vm443, %v440, %v442
        %v445 = vsel %vm443, %v442, %v440
        %s446 = scalar_lea.vmem [#allocation7], 6
        %v447 = vld [vmem:[%s446] ss:$8 sm:$0x3]
        %v449 = vlaneseq
        %v450 = vshrl.u32 %v449, 7
        %v451 = vsub.s32 0, %v450
        %v452 = vrot.slane %v447, %v451
        %v453 = vlaneseq
        %v454 = vshrl.u32 %v453, 7
        %v455 = vsub.s32 1, %v454
        %v456 = vrot.slane %v447, %v455
        %v459 = vmul.f32 %v444, %v452
        %v460 = vmul.f32 %v445, %v456
        %461 = vst [vmem:[#allocation2 + $0x60] sm:$0xff] %v459
        %462 = vst [vmem:[#allocation2 + $0x68] sm:$0xff] %v460
        %463 = vrot.lane.b32.xlu0 %v313, 112
        %v464 = vpop.permute.xlu0 %463
        %465 = vrot.lane.b32.xlu0 %v314, 112
        %v466 = vpop.permute.xlu0 %465
        %vm467 = vcmp.lt.s32.totalorder %v321, 112
        %v468 = vsel %vm467, %v464, %v466
        %v469 = vsel %vm467, %v466, %v464
        %s470 = scalar_lea.vmem [#allocation7], 7
        %v471 = vld [vmem:[%s470] ss:$8 sm:$0x3]
        %v473 = vlaneseq
        %v474 = vshrl.u32 %v473, 7
        %v475 = vsub.s32 0, %v474
        %v476 = vrot.slane %v471, %v475
        %v477 = vlaneseq
        %v478 = vshrl.u32 %v477, 7
        %v479 = vsub.s32 1, %v478
        %v480 = vrot.slane %v471, %v479
        %v483 = vmul.f32 %v468, %v476
        %v484 = vmul.f32 %v469, %v480
        %485 = vst [vmem:[#allocation2 + $0x70] sm:$0xff] %v483
        %486 = vst [vmem:[#allocation2 + $0x78] sm:$0xff] %v484
        %487 = vrot.lane.b32.xlu0 %v313, 111
        %v488 = vpop.permute.xlu0 %487
        %489 = vrot.lane.b32.xlu0 %v314, 111
        %v490 = vpop.permute.xlu0 %489
        %vm491 = vcmp.lt.s32.totalorder %v321, 111
        %v492 = vsel %vm491, %v488, %v490
        %v493 = vsel %vm491, %v490, %v488
        %s494 = scalar_lea.vmem [#allocation7], 16
        %v495 = vld [vmem:[%s494] ss:$8 sm:$0x3]
        %v497 = vlaneseq
        %v498 = vshrl.u32 %v497, 7
        %v499 = vsub.s32 0, %v498
        %v500 = vrot.slane %v495, %v499
        %v501 = vlaneseq
        %v502 = vshrl.u32 %v501, 7
        %v503 = vsub.s32 1, %v502
        %v504 = vrot.slane %v495, %v503
        %v507 = vmul.f32 %v492, %v500
        %v508 = vmul.f32 %v493, %v504
        %509 = vst [vmem:[#allocation2 + $0x80] sm:$0xff] %v507
        %510 = vst [vmem:[#allocation2 + $0x88] sm:$0xff] %v508
        %v511 = vld [vmem:[%s2] sm:$0xff]
        %v512 = vld [vmem:[#allocation2] sm:$0xff]
        %v513 = vld [vmem:[#allocation2 + $0x8] sm:$0xff]
        %v514 = vld [vmem:[#allocation2 + $0x10] sm:$0xff]
        %v515 = vld [vmem:[#allocation2 + $0x18] sm:$0xff]
        %v516 = vld [vmem:[#allocation2 + $0x20] sm:$0xff]
        %v517 = vld [vmem:[#allocation2 + $0x28] sm:$0xff]
        %v518 = vld [vmem:[#allocation2 + $0x30] sm:$0xff]
        %v519 = vld [vmem:[#allocation2 + $0x38] sm:$0xff]
        %v520 = vld [vmem:[#allocation2 + $0x40] sm:$0xff]
        %v521 = vld [vmem:[#allocation2 + $0x48] sm:$0xff]
        %v522 = vld [vmem:[#allocation2 + $0x50] sm:$0xff]
        %v523 = vld [vmem:[#allocation2 + $0x58] sm:$0xff]
        %v524 = vld [vmem:[#allocation2 + $0x60] sm:$0xff]
        %v525 = vld [vmem:[#allocation2 + $0x68] sm:$0xff]
        %v526 = vld [vmem:[#allocation2 + $0x70] sm:$0xff]
        %v527 = vld [vmem:[#allocation2 + $0x78] sm:$0xff]
        %v528 = vld [vmem:[#allocation2 + $0x80] sm:$0xff]
        %v529 = vld [vmem:[#allocation2 + $0x88] sm:$0xff]
        %v530 = vld [vmem:[%s3] sm:$0xff]
        %532 = vset.pattern.permute.xlu0 0
        %533 = vperm.xlu0 %532, %v530
        %v534 = vpop.permute.xlu0 %533
        %vm536 = vcmask 588800
        %v538 = vsel %vm536, %v511, 0
        %540 = vmatprep.subr.mxu0 %v513
        %541 = vmatpush1.msra.mxu0 %v512
        %542 = vmatprep.subr.mxu0 %v515
        %543 = vmatpush1.msra.mxu0 %v514
        %544 = vmatprep.subr.mxu0 %v517
        %545 = vmatpush1.msra.mxu0 %v516
        %546 = vmatprep.subr.mxu0 %v519
        %547 = vmatpush1.msra.mxu0 %v518
        %548 = vmatprep.subr.mxu0 %v521
        %549 = vmatpush1.msra.mxu0 %v520
        %550 = vmatprep.subr.mxu0 %v523
        %551 = vmatpush1.msra.mxu0 %v522
        %552 = vmatprep.subr.mxu0 %v525
        %553 = vmatpush1.msra.mxu0 %v524
        %554 = vmatprep.subr.mxu0 %v527
        %555 = vmatpush1.msra.mxu0 %v526
        %556 = vmatprep.subr.mxu0 %v529
        %557 = vmatpush1.msra.mxu0 %v528
        %558 = vmatprep.subr.mxu0 0.0
        %559 = vmatpush1.msra.mxu0 0.0
        %560 = vmatprep.subr.mxu0 0.0
        %561 = vmatpush1.msra.mxu0 0.0
        %562 = vmatprep.subr.mxu0 0.0
        %563 = vmatpush1.msra.mxu0 0.0
        %564 = vmatprep.subr.mxu0 0.0
        %565 = vmatpush1.msra.mxu0 0.0
        %566 = vmatprep.subr.mxu0 0.0
        %567 = vmatpush1.msra.mxu0 0.0
        %568 = vmatprep.subr.mxu0 0.0
        %569 = vmatpush1.msra.mxu0 0.0
        %570 = vmatprep.subr.mxu0 0.0
        %571 = vmatpush1.msra.mxu0 0.0
        %572 = vmatprep.subr.mxu0 0.0
        %573 = vmatpush1.msra.mxu0 0.0
        %574 = vmatprep.subr.mxu0 0.0
        %575 = vmatpush1.msra.mxu0 0.0
        %576 = vmatprep.subr.mxu0 0.0
        %577 = vmatpush1.msra.mxu0 0.0
        %578 = vmatprep.subr.mxu0 0.0
        %579 = vmatpush1.msra.mxu0 0.0
        %580 = vmatprep.subr.mxu0 0.0
        %581 = vmatpush1.msra.mxu0 0.0
        %582 = vmatprep.subr.mxu0 0.0
        %583 = vmatpush1.msra.mxu0 0.0
        %584 = vmatprep.subr.mxu0 0.0
        %585 = vmatpush1.msra.mxu0 0.0
        %586 = vmatprep.subr.mxu0 0.0
        %587 = vmatpush1.msra.mxu0 0.0
        %588 = vmatprep.subr.mxu0 0.0
        %589 = vmatpush1.msra.mxu0 0.0
        %590 = vmatprep.subr.mxu0 0.0
        %591 = vmatpush1.msra.mxu0 0.0
        %592 = vmatprep.subr.mxu0 0.0
        %593 = vmatpush1.msra.mxu0 0.0
        %594 = vmatprep.subr.mxu0 0.0
        %595 = vmatpush1.msra.mxu0 0.0
        %596 = vmatprep.subr.mxu0 0.0
        %597 = vmatpush1.msra.mxu0 0.0
        %598 = vmatprep.subr.mxu0 0.0
        %599 = vmatpush1.msra.mxu0 0.0
        %600 = vmatprep.subr.mxu0 0.0
        %601 = vmatpush1.msra.mxu0 0.0
        %602 = vmatprep.subr.mxu0 0.0
        %603 = vmatpush1.msra.mxu0 0.0
        %604 = vmatprep.mubr.f32.mxu0 0.0
        %605 = vmatmul.mubr.f32.gmra.mrb[0].mxu0 %v538
        %v606 = vpop.f32.mrb[0].mxu0
        %v607 = vadd.f32 %v534, %v606
        %v608 = vpop.f32.mrb[0].mxu0
        %v609 = vadd.f32 %v534, %v608
        %610 = vdwg.mxu0
        %vm611 = vcmp.gt.f32.partialorder %v607, 0.0
        %vm612 = vcmp.gt.f32.partialorder %v609, 0.0
        %v613 = vstv %s315
        %v614 = vmul.f32 %v613, %v607
        %v615 = vmul.f32 %v613, %v609
        %v616 = vsel %vm611, %v607, %v614
        %v617 = vsel %vm612, %v609, %v615
        %618 = vrot.lane.b32.xlu0 %v616, 17
        %v619 = vpop.permute.xlu0 %618
        %620 = vrot.lane.b32.xlu0 %v617, 17
        %v621 = vpop.permute.xlu0 %620
        %v622 = vsel %vm322, %v619, %v621
        %v623 = vsel %vm322, %v621, %v619
        %v624 = vld [vmem:[#allocation7] ss:$8 sm:$0x3]
        %v626 = vlaneseq
        %v627 = vshrl.u32 %v626, 7
        %v628 = vsub.s32 0, %v627
        %v629 = vrot.slane %v624, %v628
        %v630 = vlaneseq
        %v631 = vshrl.u32 %v630, 7
        %v632 = vsub.s32 1, %v631
        %v633 = vrot.slane %v624, %v632
        %v636 = vmul.f32 %v623, %v629
        %v637 = vmul.f32 %v622, %v633
        %638 = vst [vmem:[#allocation2] sm:$0xff] %v636
        %639 = vst [vmem:[#allocation2 + $0x8] sm:$0xff] %v637
        %640 = vrot.lane.b32.xlu0 %v616, 16
        %v641 = vpop.permute.xlu0 %640
        %642 = vrot.lane.b32.xlu0 %v617, 16
        %v643 = vpop.permute.xlu0 %642
        %v644 = vsel %vm345, %v641, %v643
        %v645 = vsel %vm345, %v643, %v641
        %v646 = vld [vmem:[%s348] ss:$8 sm:$0x3]
        %v648 = vlaneseq
        %v649 = vshrl.u32 %v648, 7
        %v650 = vsub.s32 0, %v649
        %v651 = vrot.slane %v646, %v650
        %v652 = vlaneseq
        %v653 = vshrl.u32 %v652, 7
        %v654 = vsub.s32 1, %v653
        %v655 = vrot.slane %v646, %v654
        %v658 = vmul.f32 %v645, %v651
        %v659 = vmul.f32 %v644, %v655
        %660 = vst [vmem:[#allocation2 + $0x10] sm:$0xff] %v658
        %661 = vst [vmem:[#allocation2 + $0x18] sm:$0xff] %v659
        %662 = vrot.lane.b32.xlu0 %v616, 15
        %v663 = vpop.permute.xlu0 %662
        %664 = vrot.lane.b32.xlu0 %v617, 15
        %v665 = vpop.permute.xlu0 %664
        %v666 = vsel %vm369, %v663, %v665
        %v667 = vsel %vm369, %v665, %v663
        %v668 = vld [vmem:[%s372] ss:$8 sm:$0x3]
        %v670 = vlaneseq
        %v671 = vshrl.u32 %v670, 7
        %v672 = vsub.s32 0, %v671
        %v673 = vrot.slane %v668, %v672
        %v674 = vlaneseq
        %v675 = vshrl.u32 %v674, 7
        %v676 = vsub.s32 1, %v675
        %v677 = vrot.slane %v668, %v676
        %v680 = vmul.f32 %v667, %v673
        %v681 = vmul.f32 %v666, %v677
        %682 = vst [vmem:[#allocation2 + $0x20] sm:$0xff] %v680
        %683 = vst [vmem:[#allocation2 + $0x28] sm:$0xff] %v681
        %684 = vrot.lane.b32.xlu0 %v616, 1
        %v685 = vpop.permute.xlu0 %684
        %686 = vrot.lane.b32.xlu0 %v617, 1
        %v687 = vpop.permute.xlu0 %686
        %v688 = vsel %vm393, %v685, %v687
        %v689 = vsel %vm393, %v687, %v685
        %v690 = vld [vmem:[%s396] ss:$8 sm:$0x3]
        %v692 = vlaneseq
        %v693 = vshrl.u32 %v692, 7
        %v694 = vsub.s32 0, %v693
        %v695 = vrot.slane %v690, %v694
        %v696 = vlaneseq
        %v697 = vshrl.u32 %v696, 7
        %v698 = vsub.s32 1, %v697
        %v699 = vrot.slane %v690, %v698
        %v702 = vmul.f32 %v689, %v695
        %v703 = vmul.f32 %v688, %v699
        %704 = vst [vmem:[#allocation2 + $0x30] sm:$0xff] %v702
        %705 = vst [vmem:[#allocation2 + $0x38] sm:$0xff] %v703
        %706 = vst [vmem:[#allocation2 + $0x40] sm:$0xff] %v616
        %707 = vst [vmem:[#allocation2 + $0x48] sm:$0xff] %v617
        %708 = vrot.lane.b32.xlu0 %v616, 127
        %v709 = vpop.permute.xlu0 %708
        %710 = vrot.lane.b32.xlu0 %v617, 127
        %v711 = vpop.permute.xlu0 %710
        %v712 = vsel %vm419, %v709, %v711
        %v713 = vsel %vm419, %v711, %v709
        %v714 = vld [vmem:[%s422] ss:$8 sm:$0x3]
        %v716 = vlaneseq
        %v717 = vshrl.u32 %v716, 7
        %v718 = vsub.s32 0, %v717
        %v719 = vrot.slane %v714, %v718
        %v720 = vlaneseq
        %v721 = vshrl.u32 %v720, 7
        %v722 = vsub.s32 1, %v721
        %v723 = vrot.slane %v714, %v722
        %v726 = vmul.f32 %v712, %v719
        %v727 = vmul.f32 %v713, %v723
        %728 = vst [vmem:[#allocation2 + $0x50] sm:$0xff] %v726
        %729 = vst [vmem:[#allocation2 + $0x58] sm:$0xff] %v727
        %730 = vrot.lane.b32.xlu0 %v616, 113
        %v731 = vpop.permute.xlu0 %730
        %732 = vrot.lane.b32.xlu0 %v617, 113
        %v733 = vpop.permute.xlu0 %732
        %v734 = vsel %vm443, %v731, %v733
        %v735 = vsel %vm443, %v733, %v731
        %v736 = vld [vmem:[%s446] ss:$8 sm:$0x3]
        %v738 = vlaneseq
        %v739 = vshrl.u32 %v738, 7
        %v740 = vsub.s32 0, %v739
        %v741 = vrot.slane %v736, %v740
        %v742 = vlaneseq
        %v743 = vshrl.u32 %v742, 7
        %v744 = vsub.s32 1, %v743
        %v745 = vrot.slane %v736, %v744
        %v748 = vmul.f32 %v734, %v741
        %v749 = vmul.f32 %v735, %v745
        %750 = vst [vmem:[#allocation2 + $0x60] sm:$0xff] %v748
        %751 = vst [vmem:[#allocation2 + $0x68] sm:$0xff] %v749
        %752 = vrot.lane.b32.xlu0 %v616, 112
        %v753 = vpop.permute.xlu0 %752
        %754 = vrot.lane.b32.xlu0 %v617, 112
        %v755 = vpop.permute.xlu0 %754
        %v756 = vsel %vm467, %v753, %v755
        %v757 = vsel %vm467, %v755, %v753
        %v758 = vld [vmem:[%s470] ss:$8 sm:$0x3]
        %v760 = vlaneseq
        %v761 = vshrl.u32 %v760, 7
        %v762 = vsub.s32 0, %v761
        %v763 = vrot.slane %v758, %v762
        %v764 = vlaneseq
        %v765 = vshrl.u32 %v764, 7
        %v766 = vsub.s32 1, %v765
        %v767 = vrot.slane %v758, %v766
        %v770 = vmul.f32 %v756, %v763
        %v771 = vmul.f32 %v757, %v767
        %772 = vst [vmem:[#allocation2 + $0x70] sm:$0xff] %v770
        %773 = vst [vmem:[#allocation2 + $0x78] sm:$0xff] %v771
        %774 = vrot.lane.b32.xlu0 %v616, 111
        %v775 = vpop.permute.xlu0 %774
        %776 = vrot.lane.b32.xlu0 %v617, 111
        %v777 = vpop.permute.xlu0 %776
        %v778 = vsel %vm491, %v775, %v777
        %v779 = vsel %vm491, %v777, %v775
        %v780 = vld [vmem:[%s494] ss:$8 sm:$0x3]
        %v782 = vlaneseq
        %v783 = vshrl.u32 %v782, 7
        %v784 = vsub.s32 0, %v783
        %v785 = vrot.slane %v780, %v784
        %v786 = vlaneseq
        %v787 = vshrl.u32 %v786, 7
        %v788 = vsub.s32 1, %v787
        %v789 = vrot.slane %v780, %v788
        %v792 = vmul.f32 %v778, %v785
        %v793 = vmul.f32 %v779, %v789
        %794 = vst [vmem:[#allocation2 + $0x80] sm:$0xff] %v792
        %795 = vst [vmem:[#allocation2 + $0x88] sm:$0xff] %v793
        %v796 = vld [vmem:[%s5] sm:$0xff]
        %v797 = vld [vmem:[#allocation2] sm:$0xff]
        %v798 = vld [vmem:[#allocation2 + $0x8] sm:$0xff]
        %v799 = vld [vmem:[#allocation2 + $0x10] sm:$0xff]
        %v800 = vld [vmem:[#allocation2 + $0x18] sm:$0xff]
        %v801 = vld [vmem:[#allocation2 + $0x20] sm:$0xff]
        %v802 = vld [vmem:[#allocation2 + $0x28] sm:$0xff]
        %v803 = vld [vmem:[#allocation2 + $0x30] sm:$0xff]
        %v804 = vld [vmem:[#allocation2 + $0x38] sm:$0xff]
        %v805 = vld [vmem:[#allocation2 + $0x40] sm:$0xff]
        %v806 = vld [vmem:[#allocation2 + $0x48] sm:$0xff]
        %v807 = vld [vmem:[#allocation2 + $0x50] sm:$0xff]
        %v808 = vld [vmem:[#allocation2 + $0x58] sm:$0xff]
        %v809 = vld [vmem:[#allocation2 + $0x60] sm:$0xff]
        %v810 = vld [vmem:[#allocation2 + $0x68] sm:$0xff]
        %v811 = vld [vmem:[#allocation2 + $0x70] sm:$0xff]
        %v812 = vld [vmem:[#allocation2 + $0x78] sm:$0xff]
        %v813 = vld [vmem:[#allocation2 + $0x80] sm:$0xff]
        %v814 = vld [vmem:[#allocation2 + $0x88] sm:$0xff]
        %v815 = vld [vmem:[%s6] sm:$0xff]
        %817 = vset.pattern.permute.xlu0 0
        %818 = vperm.xlu0 %817, %v815
        %v819 = vpop.permute.xlu0 %818
        %v822 = vsel %vm536, %v796, 0
        %824 = vmatprep.subr.mxu0 %v798
        %825 = vmatpush1.msra.mxu0 %v797
        %826 = vmatprep.subr.mxu0 %v800
        %827 = vmatpush1.msra.mxu0 %v799
        %828 = vmatprep.subr.mxu0 %v802
        %829 = vmatpush1.msra.mxu0 %v801
        %830 = vmatprep.subr.mxu0 %v804
        %831 = vmatpush1.msra.mxu0 %v803
        %832 = vmatprep.subr.mxu0 %v806
        %833 = vmatpush1.msra.mxu0 %v805
        %834 = vmatprep.subr.mxu0 %v808
        %835 = vmatpush1.msra.mxu0 %v807
        %836 = vmatprep.subr.mxu0 %v810
        %837 = vmatpush1.msra.mxu0 %v809
        %838 = vmatprep.subr.mxu0 %v812
        %839 = vmatpush1.msra.mxu0 %v811
        %840 = vmatprep.subr.mxu0 %v814
        %841 = vmatpush1.msra.mxu0 %v813
        %842 = vmatprep.subr.mxu0 0.0
        %843 = vmatpush1.msra.mxu0 0.0
        %844 = vmatprep.subr.mxu0 0.0
        %845 = vmatpush1.msra.mxu0 0.0
        %846 = vmatprep.subr.mxu0 0.0
        %847 = vmatpush1.msra.mxu0 0.0
        %848 = vmatprep.subr.mxu0 0.0
        %849 = vmatpush1.msra.mxu0 0.0
        %850 = vmatprep.subr.mxu0 0.0
        %851 = vmatpush1.msra.mxu0 0.0
        %852 = vmatprep.subr.mxu0 0.0
        %853 = vmatpush1.msra.mxu0 0.0
        %854 = vmatprep.subr.mxu0 0.0
        %855 = vmatpush1.msra.mxu0 0.0
        %856 = vmatprep.subr.mxu0 0.0
        %857 = vmatpush1.msra.mxu0 0.0
        %858 = vmatprep.subr.mxu0 0.0
        %859 = vmatpush1.msra.mxu0 0.0
        %860 = vmatprep.subr.mxu0 0.0
        %861 = vmatpush1.msra.mxu0 0.0
        %862 = vmatprep.subr.mxu0 0.0
        %863 = vmatpush1.msra.mxu0 0.0
        %864 = vmatprep.subr.mxu0 0.0
        %865 = vmatpush1.msra.mxu0 0.0
        %866 = vmatprep.subr.mxu0 0.0
        %867 = vmatpush1.msra.mxu0 0.0
        %868 = vmatprep.subr.mxu0 0.0
        %869 = vmatpush1.msra.mxu0 0.0
        %870 = vmatprep.subr.mxu0 0.0
        %871 = vmatpush1.msra.mxu0 0.0
        %872 = vmatprep.subr.mxu0 0.0
        %873 = vmatpush1.msra.mxu0 0.0
        %874 = vmatprep.subr.mxu0 0.0
        %875 = vmatpush1.msra.mxu0 0.0
        %876 = vmatprep.subr.mxu0 0.0
        %877 = vmatpush1.msra.mxu0 0.0
        %878 = vmatprep.subr.mxu0 0.0
        %879 = vmatpush1.msra.mxu0 0.0
        %880 = vmatprep.subr.mxu0 0.0
        %881 = vmatpush1.msra.mxu0 0.0
        %882 = vmatprep.subr.mxu0 0.0
        %883 = vmatpush1.msra.mxu0 0.0
        %884 = vmatprep.subr.mxu0 0.0
        %885 = vmatpush1.msra.mxu0 0.0
        %886 = vmatprep.subr.mxu0 0.0
        %887 = vmatpush1.msra.mxu0 0.0
        %888 = vmatprep.mubr.f32.mxu0 0.0
        %889 = vmatmul.mubr.f32.gmra.mrb[0].mxu0 %v822
        %v890 = vpop.f32.mrb[0].mxu0
        %v891 = vadd.f32 %v819, %v890
        %v892 = vpop.f32.mrb[0].mxu0
        %v893 = vadd.f32 %v819, %v892
        %894 = vdwg.mxu0
        %v895 = vadd.f32 %v891, %v313
        %v896 = vadd.f32 %v893, %v314
        %897 = vst [vmem:[%s310] sm:$0xff] %v895
        %898 = vst [vmem:[%s310 + $0x8] sm:$0xff] %v896
        %s899 = sand.u32 %s186, 1
        %s900 = scalar_lea.sflag [#allocation6], %s899
        %s901 = sand.u32 %s186, 1
        %s902 = smul.addr %s901, 16
        %s903 = scalar_lea.vmem [#allocation9], %s902
        // Predicated region
        $region57: #{tpu_custom_call.1} parent=47 // pred_check
          %p904 = pneg %p196
        $region58: #{tpu_custom_call.1} parent=47 // pred_check_branch
          %906 = sbr.rel (%p904) target = $region60
        $region59: #{tpu_custom_call.1} parent=47 // pred_region
          %s907 = smul.u32 2, %s26
          %s909 = ssub.s32 256, 256
          %910 = vsyncadd %s900, %s909
          %s911 = smul.addr %s907, 128
          %s912 = scalar_lea.hbm %s7, %s911
          %s914 = sshll.u32 %s903, 4
          %s915 = int_to_ptr.vmem [resolvable:$true] %s914
          %917 = dma.vmem_to_hbm [thread:$0]  %s915, 256, %s912, %s900
        $region60: #{tpu_custom_call.1} parent=47 // pred_fallthru
          _
      $region48: #{tpu_custom_call.1} parent=5 // pred_fallthru
        _
      %p918 = scmp.le.s32.totalorder 2, %s21
      // Predicated region
      $region61: #{tpu_custom_call.1} parent=5 // pred_check
        %p919 = pneg %p918
      $region62: #{tpu_custom_call.1} parent=5 // pred_check_branch
        %921 = sbr.rel (%p919) target = $region64
      $region63: #{tpu_custom_call.1} parent=5 // pred_region
        %s922 = ssub.s32 %s21, 2
        // Predicated region
        $region65: #{tpu_custom_call.1} parent=63 // pred_check
          %p923 = pneg %p202
        $region66: #{tpu_custom_call.1} parent=63 // pred_check_branch
          %925 = sbr.rel (%p923) target = $region68
        $region67: #{tpu_custom_call.1} parent=63 // pred_region
          %s926 = sand.u32 %s187, 1
          %s927 = scalar_lea.sflag [#allocation6], %s926
          %s928 = sand.u32 %s187, 1
          %s929 = smul.addr %s928, 16
          %s930 = scalar_lea.vmem [#allocation9], %s929
          %931 = dma.done %s927, 256
        $region68: #{tpu_custom_call.1} parent=63 // pred_fallthru
          _
      $region64: #{tpu_custom_call.1} parent=5 // pred_fallthru
        _
    $region6: #{tpu_custom_call.1} parent=1 // loop_footer
      %s25 = sadd.s32 1, %s21
    $region7: #{tpu_custom_call.1} parent=1 // loop_footer_branch
      %20 = sbr.rel target = $region3
    $region8: #{tpu_custom_call.1} parent=1 // loop_exit
      _
    %932 = vsyncpa [#allocation5], 1
    %s933 = scalar_lea.sflag [#allocation5], 1
    %934 = vsyncpa %s933, 1
    %935 = vsyncpa [#allocation8], 1
    %936 = vsyncpa [#allocation6], 1
    %s937 = scalar_lea.sflag [#allocation6], 1
    %938 = vsyncpa %s937, 1

</llo_original>
